<compile_context>
chip_gen: v7x
topology: tpu7x:2x2x1
jax: 0.10.0
libtpu: 0.0.40
codegen_flags: <defaults>
</compile_context>

<pallas_src>
import jax
import jax.numpy as jnp
from jax.experimental import pallas as pl
from jax.experimental.pallas import tpu as pltpu

_LANE = 128
_TARGET_BLOCK_BYTES = 2 * 1024 * 1024  # ~2 MiB/block: 1 in + 2 out, double-buffered
                                       # => ~12 MiB VMEM, safe on v5e/v6e/v7x defaults


def _sublane_multiple(dtype) -> int:
    itemsize = jnp.dtype(dtype).itemsize
    if itemsize >= 4:
        return 8
    if itemsize == 2:
        return 16
    return 32


def _round_up(x: int, m: int) -> int:
    return (x + m - 1) // m * m


def _make_indep_normal_kernel(func, compute_in_f32: bool):
    """Fused kernel: mean = func(x), std = 1, written in one pass."""

    def kernel(x_ref, mean_ref, std_ref):
        x = x_ref[...]
        if compute_in_f32 and x.dtype != jnp.float32:
            y = func(x.astype(jnp.float32))
        else:
            y = func(x)
        mean_ref[...] = y.astype(mean_ref.dtype)
        std_ref[...] = jnp.ones(std_ref.shape, dtype=std_ref.dtype)

    return kernel


class PallasIndepNormal:
    """Pallas equivalent of the PyTorch `IndepNormal` module.

    forward(x) -> (mean, std) with mean = backbone(x) and std = ones_like(mean).
    """

    def __init__(self, backbone, *, backbone_is_elementwise=True,
                 min_pallas_bytes=1 << 20):
        self.backbone = backbone
        self.backbone_is_elementwise = backbone_is_elementwise
        self.min_pallas_bytes = min_pallas_bytes

    def __call__(self, x):
        if not self.backbone_is_elementwise:
            # TODO(synk): arbitrary (non-elementwise) backbone modules have no
            # generic Pallas lowering; run the backbone in plain JAX.
            mean = self.backbone(x)
            return mean, jnp.ones_like(mean)

        n = x.size
        # Small-input / unaligned fast path: XLA's fused elementwise op is
        # already optimal below ~1 MiB, and it avoids any padding copy when the
        # element count is not lane-aligned.
        if n == 0 or x.nbytes < self.min_pallas_bytes or n % _LANE != 0:
            mean = self.backbone(x)
            return mean, jnp.ones_like(mean)

        return self._pallas_forward(x)

    # predict() in the PyTorch module wraps (mean, std) in dist.Normal(...).to_event();
    # the distribution object itself has no Pallas equivalent, so we just return the stats.
    def predict(self, x, event_ndim=None):
        # TODO(synk): no Pallas/JAX-only equivalent of pyro's dist.Normal(...).to_event().
        return self(x)

    def _pallas_forward(self, x):
        orig_shape = x.shape
        dtype = x.dtype
        itemsize = jnp.dtype(dtype).itemsize
        n = x.size

        # Widest lane-dense slab width that divides n exactly -> no padding copy.
        width = _LANE
        for w in (4096, 2048, 1024, 512, 256):
            if n % w == 0:
                width = w
                break
        rows = n // width
        slab = x.reshape(rows, width)

        sub = _sublane_multiple(dtype)
        target_rows = max(sub, (_TARGET_BLOCK_BYTES // (width * itemsize)) // sub * sub)
        block_rows = min(target_rows, rows)  # == rows (full dim) or a multiple of `sub`
        grid_n = pl.cdiv(rows, block_rows)

        # Keep >= 2 grid steps when feasible so "parallel" semantics can shard
        # the grid across v7x's two TensorCores (no-op on v5e/v6e).
        if grid_n < 2 and rows >= 2 * sub:
            block_rows = _round_up(pl.cdiv(rows, 2), sub)
            grid_n = pl.cdiv(rows, block_rows)

        # v5e has no bf16 VPU/EUP: compute sub-32-bit dtypes in f32, cast on store.
        compute_in_f32 = itemsize < 4
        kernel = _make_indep_normal_kernel(self.backbone, compute_in_f32)

        block_spec = pl.BlockSpec((block_rows, width), lambda i: (i, 0))

        mean_slab, std_slab = pl.pallas_call(
            kernel,
            out_shape=(
                jax.ShapeDtypeStruct((rows, width), dtype),
                jax.ShapeDtypeStruct((rows, width), dtype),
            ),
            grid=(grid_n,),
            in_specs=[block_spec],
            out_specs=(block_spec, block_spec),
            compiler_params=pltpu.CompilerParams(
                dimension_semantics=("parallel",),
            ),
        )(slab)

        return mean_slab.reshape(orig_shape), std_slab.reshape(orig_shape)


if __name__ == "__main__":
    key = jax.random.PRNGKey(0)
    # Small NCHW input consistent with how IndepNormal heads are used.
    x = jax.random.normal(key, (2, 4, 16, 16), dtype=jnp.float32)

    # Example elementwise backbone (stand-in for the user-supplied nn.Module).
    backbone = jnp.tanh

    # min_pallas_bytes=0 forces the Pallas path even at this small test shape;
    # with the default threshold such tiny inputs take the plain-JAX fast path.
    model = PallasIndepNormal(backbone, min_pallas_bytes=0)
    mean, std = jax.block_until_ready(model(x))

    ref_mean = jnp.tanh(x)
    ref_std = jnp.ones_like(x)
    assert mean.shape == x.shape and std.shape == x.shape
    assert mean.dtype == x.dtype and std.dtype == x.dtype
    assert jnp.allclose(mean, ref_mean, atol=1e-6, rtol=1e-6)
    assert jnp.array_equal(std, ref_std)

    # Also exercise the default small-input fast path.
    model_default = PallasIndepNormal(backbone)
    mean2, std2 = jax.block_until_ready(model_default(x))
    assert jnp.allclose(mean2, ref_mean, atol=1e-6, rtol=1e-6)
    assert jnp.array_equal(std2, ref_std)

    print("KERNEL_OK")
</pallas_src>

<mosaic_0001>
module attributes {stable_mosaic.version = 11 : i64} {
  func.func @kernel(%arg0: i32, %arg1: memref<1x2048xf32, #tpu.memory_space<vmem>>, %arg2: memref<1x2048xf32, #tpu.memory_space<vmem>>, %arg3: memref<1x2048xf32, #tpu.memory_space<vmem>>) attributes {dimension_semantics = [#tpu.dimension_semantics<parallel>], iteration_bounds = array<i64: 1>, scalar_prefetch = 0 : i64, scratch_operands = 0 : i64, tpu.core_type = #tpu.core_type<tc>, window_params = [{transform_indices = @transform_0, window_bounds = array<i64: 1, 2048>}, {transform_indices = @transform_1, window_bounds = array<i64: 1, 2048>}, {transform_indices = @transform_2, window_bounds = array<i64: 1, 2048>}]} {
    %c0 = arith.constant 0 : index
    %c0_0 = arith.constant 0 : index
    %0 = vector.load %arg1[%c0, %c0_0] : memref<1x2048xf32, #tpu.memory_space<vmem>>, vector<1x2048xf32>
    %1 = math.tanh %0 : vector<1x2048xf32>
    %c0_1 = arith.constant 0 : index
    %c0_2 = arith.constant 0 : index
    %2 = vector.load %arg2[%c0_1, %c0_2] : memref<1x2048xf32, #tpu.memory_space<vmem>>, vector<1x2048xf32>
    tpu.vector_store %arg2[%c0_1, %c0_2], %1 {strides = array<i32>} : memref<1x2048xf32, #tpu.memory_space<vmem>>, vector<1x2048xf32>,
    %cst = arith.constant 1.000000e+00 : f32
    %3 = vector.broadcast %cst : f32 to vector<1x2048xf32>
    %c0_3 = arith.constant 0 : index
    %c0_4 = arith.constant 0 : index
    %4 = vector.load %arg3[%c0_3, %c0_4] : memref<1x2048xf32, #tpu.memory_space<vmem>>, vector<1x2048xf32>
    tpu.vector_store %arg3[%c0_3, %c0_4], %3 {strides = array<i32>} : memref<1x2048xf32, #tpu.memory_space<vmem>>, vector<1x2048xf32>,
    return
  }
  func.func @transform_0(%arg0: i32) -> (i32, i32) {
    %c0_i32 = arith.constant 0 : i32
    %c0_i32_0 = arith.constant 0 : i32
    return %arg0, %c0_i32 : i32, i32
  }
  func.func @transform_1(%arg0: i32) -> (i32, i32) {
    %c0_i32 = arith.constant 0 : i32
    %c0_i32_0 = arith.constant 0 : i32
    return %arg0, %c0_i32 : i32, i32
  }
  func.func @transform_2(%arg0: i32) -> (i32, i32) {
    %c0_i32 = arith.constant 0 : i32
    %c0_i32_0 = arith.constant 0 : i32
    return %arg0, %c0_i32 : i32, i32
  }
}

</mosaic_0001>

<llo_original>
// kernel: tpu_custom_call.1
$region0: #{tpu_custom_call.1}
  #allocation0 [shape = 'u32[]', space=smem, size = 0x4, offset = 0x4, fixed_abs, tag = 'smem constant byte address 0x4 - core index']
  #allocation1 [shape = 'u32[144,128]{1,0:T(1,128)}', space=vmem, size = 0x12000, scoped, tag = 'internal scratch']
  %s0 = inlined_call_operand.hbm [shape: f32[1,2048], index: 0, kind: input, shape index: {}]
  %s1 = inlined_call_operand.hbm [shape: f32[1,2048], index: 1, kind: output, shape index: {0}]
  %s2 = inlined_call_operand.hbm [shape: f32[1,2048], index: 2, kind: output, shape index: {1}]
  %3 = xla_tuple %s1, %s2
  %s4 = sld [smem:[#allocation0]]
  $region26: #{tpu_custom_call.1} parent=0
    _
  %s6 = ssub.s32 1, %s4
  %s7 = scalar_select 0, %s6, %s4
  $region1: #{tpu_custom_call.1} parent=0
    #allocation2 [shape = 'u8[8192]{0}', space=vmem, size = 0x2000, scoped, tag = 'input window, operand 0, single buffered']
    #allocation3 [shape = 's32[1]{0}', space=sflag, size = 0x4, scoped, tag = 'scoped memory for tpu_custom_call.1']
    #allocation4 [shape = 's32[1]{0}', space=sflag, size = 0x4, scoped, tag = 'scoped memory for tpu_custom_call.1']
    #allocation5 [shape = 'u8[8192]{0}', space=vmem, size = 0x2000, scoped, tag = 'output window, operand 0, single buffered']
    #allocation6 [shape = 'u8[8192]{0}', space=vmem, size = 0x2000, scoped, tag = 'output window, operand 1, single buffered']
    #allocation7 [shape = 's32[1]{0}', space=sflag, size = 0x4, scoped, tag = 'scoped memory for tpu_custom_call.1']
    %8 = vsyncpa [#allocation3], 0
    %9 = vsyncpa [#allocation4], 0
    %10 = vsyncpa [#allocation7], 0
    // Predicated region
    $region2: #{tpu_custom_call.1} parent=1 // pred_check
      _
    $region3: #{tpu_custom_call.1} parent=1 // pred_check_branch
      %12 = sbr.rel (0) target = $region5
    $region4: #{tpu_custom_call.1} parent=1 // pred_region
      %s14 = ssub.s32 256, 256
      %15 = vsyncadd [#allocation3], %s14
      %s17 = sshll.u32 [#allocation2], 4
      %s18 = int_to_ptr.vmem [resolvable:$true] %s17
      %20 = dma.hbm_to_vmem [thread:$0]  %s0, 256, %s18, [#allocation3]
    $region5: #{tpu_custom_call.1} parent=1 // pred_fallthru
      _
    // Predicated region
    $region6: #{tpu_custom_call.1} parent=1 // pred_check
      _
    $region7: #{tpu_custom_call.1} parent=1 // pred_check_branch
      %22 = sbr.rel (0) target = $region9
    $region8: #{tpu_custom_call.1} parent=1 // pred_region
      %23 = dma.done [#allocation3], 256
    $region9: #{tpu_custom_call.1} parent=1 // pred_fallthru
      _
    %v24 = vld [vmem:[#allocation2] sm:$0xff]
    %v25 = vld [vmem:[#allocation2 + $0x8] sm:$0xff]
    %v26 = vtanh.pop %v24
    %v27 = vtanh.pop %v25
    %28 = vst [vmem:[#allocation5] sm:$0xff] %v26
    %29 = vst [vmem:[#allocation5 + $0x8] sm:$0xff] %v27
    %30 = vst [vmem:[#allocation6] sm:$0xff] 1.0
    %31 = vst [vmem:[#allocation6 + $0x8] sm:$0xff] 1.0
    // Predicated region
    $region10: #{tpu_custom_call.1} parent=1 // pred_check
      _
    $region11: #{tpu_custom_call.1} parent=1 // pred_check_branch
      %33 = sbr.rel (0) target = $region13
    $region12: #{tpu_custom_call.1} parent=1 // pred_region
      %s35 = ssub.s32 256, 256
      %36 = vsyncadd [#allocation4], %s35
      %s38 = sshll.u32 [#allocation5], 4
      %s39 = int_to_ptr.vmem [resolvable:$true] %s38
      %41 = dma.vmem_to_hbm [thread:$0]  %s39, 256, %s1, [#allocation4]
    $region13: #{tpu_custom_call.1} parent=1 // pred_fallthru
      _
    // Predicated region
    $region14: #{tpu_custom_call.1} parent=1 // pred_check
      _
    $region15: #{tpu_custom_call.1} parent=1 // pred_check_branch
      %43 = sbr.rel (0) target = $region17
    $region16: #{tpu_custom_call.1} parent=1 // pred_region
      %s45 = ssub.s32 256, 256
      %46 = vsyncadd [#allocation7], %s45
      %s48 = sshll.u32 [#allocation6], 4
      %s49 = int_to_ptr.vmem [resolvable:$true] %s48
      %51 = dma.vmem_to_hbm [thread:$0]  %s49, 256, %s2, [#allocation7]
    $region17: #{tpu_custom_call.1} parent=1 // pred_fallthru
      _
    // Predicated region
    $region18: #{tpu_custom_call.1} parent=1 // pred_check
      _
    $region19: #{tpu_custom_call.1} parent=1 // pred_check_branch
      %53 = sbr.rel (0) target = $region21
    $region20: #{tpu_custom_call.1} parent=1 // pred_region
      %54 = dma.done [#allocation4], 256
    $region21: #{tpu_custom_call.1} parent=1 // pred_fallthru
      _
    // Predicated region
    $region22: #{tpu_custom_call.1} parent=1 // pred_check
      _
    $region23: #{tpu_custom_call.1} parent=1 // pred_check_branch
      %56 = sbr.rel (0) target = $region25
    $region24: #{tpu_custom_call.1} parent=1 // pred_region
      %57 = dma.done [#allocation7], 256
    $region25: #{tpu_custom_call.1} parent=1 // pred_fallthru
      _
    %58 = vsyncpa [#allocation3], 1
    %59 = vsyncpa [#allocation4], 1
    %60 = vsyncpa [#allocation7], 1

</llo_original>
